<compile_context>
chip_gen: v6e
topology: v6e:2x2x1
jax: 0.10.0
libtpu: 0.0.40
codegen_flags: <defaults>
</compile_context>

<pallas_src>
import functools

import jax
import jax.numpy as jnp
from jax import lax
from jax.experimental import pallas as pl
from jax.experimental.pallas import tpu as pltpu


def _round_up(x, m):
    return ((x + m - 1) // m) * m


def _gelu(x, approximate):
    if approximate:
        # tanh-approx: most work goes to the EUP slot, co-issues with MXU pushes.
        c = jnp.float32(0.7978845608028654)  # sqrt(2/pi)
        return 0.5 * x * (1.0 + jnp.tanh(c * (x + 0.044715 * x * x * x)))
    # Exact erf-based GELU -- torch.nn.GELU() default (~10-20 VALU ops/element).
    return 0.5 * x * (1.0 + lax.erf(x * jnp.float32(0.7071067811865476)))


def mlp_kernel(x_ref, w1_ref, b1_ref, w2_ref, b2_ref, o_ref, *, approximate):
    # Grid: (row tiles i, hidden chunks k).  Per step:
    #   x_ref:  (tm, n_embd) bf16
    #   w1_ref: (n_embd, th) bf16    b1_ref: (1, th)     f32
    #   w2_ref: (th, n_embd) bf16    b2_ref: (1, n_embd) f32
    #   o_ref:  (tm, n_embd) f32  -- doubles as the accumulator (resident
    #                                across k; written back on row-tile change).
    k = pl.program_id(1)

    @pl.when(k == 0)
    def _():
        # Fuse the c_proj bias into the accumulator init (drops a VALU pass and
        # the separate f32 scratch buffer).
        o_ref[...] = jnp.broadcast_to(b2_ref[...], o_ref.shape)

    x = x_ref[...]
    # First matmul over this hidden chunk; bias-add + GELU stay chunk-sized f32.
    h = jnp.dot(x, w1_ref[...], preferred_element_type=jnp.float32)
    h = h + b1_ref[...]
    h = _gelu(h, approximate)
    # Second matmul: accumulate the partial projection into the f32 output block.
    o_ref[...] += jnp.dot(h.astype(w2_ref.dtype), w2_ref[...],
                          preferred_element_type=jnp.float32)


def _vmem_capacity_bytes():
    try:
        return int(pltpu.get_tpu_info().vmem_capacity_bytes)
    except Exception:
        return 128 * 1024 * 1024  # v5e/v6e default


def _footprint_bytes(tm, n_embd, th):
    # Rough per-step VMEM model (double-buffered pipeline buffers + temporaries).
    bf, f32 = 2, 4
    x_buf = 2 * tm * n_embd * bf
    w1_buf = 2 * n_embd * th * bf
    w2_buf = 2 * th * n_embd * bf
    b_buf = 2 * (th + n_embd) * f32
    o_buf = 2 * tm * n_embd * f32
    h_tmp = tm * th * (f32 + bf)  # f32 GELU intermediate + bf16 cast copy
    return x_buf + w1_buf + w2_buf + b_buf + o_buf + h_tmp


def _choose_tiles(M, n_embd, hidden):
    cap = _vmem_capacity_bytes()
    # ~51 MiB on v7x (64 MiB/TC), ~102 MiB on v5e/v6e (128 MiB).
    vmem_limit = min(int(cap * 0.8), 112 * 1024 * 1024)
    budget = int(cap * 0.6)  # headroom for Mosaic internal scratch

    # Row tile: large to amortize per-step cost and weight re-streaming;
    # 16-aligned so bf16 (16,128) native tiles stay unmasked.
    tm = max(16, min(512, _round_up(M, 16)))

    # Hidden chunk candidates: the full hidden extent (fully resident weights)
    # or a divisor of it -- guarantees no garbage-padded tail chunk.
    cands = [hidden] + [c for c in (4096, 2048, 1024, 512, 256, 128)
                        if c < hidden and hidden % c == 0]
    while True:
        for th in cands:
            if _footprint_bytes(tm, n_embd, th) <= budget:
                return tm, th, vmem_limit
        if tm <= 16:
            return 16, cands[-1], vmem_limit
        tm = max(16, tm // 2)


@functools.partial(jax.jit, static_argnames=("tm", "th", "vmem_limit", "approximate"))
def _mlp_pallas(x2, w1, b1, w2, b2, *, tm, th, vmem_limit, approximate):
    M, n_embd = x2.shape
    hidden = w1.shape[1]

    # bf16 MXU operands (f32 accumulation inside the kernel); biases stay f32.
    x_bf = x2.astype(jnp.bfloat16)
    w1_bf = w1.astype(jnp.bfloat16)
    w2_bf = w2.astype(jnp.bfloat16)
    b1_f = b1.astype(jnp.float32)
    b2_f = b2.astype(jnp.float32)

    grid_i = pl.cdiv(M, tm)
    grid_k = hidden // th  # th always divides hidden
    grid = (grid_i, grid_k)

    # Cost estimate reflecting real traffic: when the hidden axis is chunked,
    # W1/W2 are re-streamed once per row tile.
    w_refetch = grid_i if grid_k > 1 else 1
    cost = pl.CostEstimate(
        flops=4 * M * n_embd * hidden,
        transcendentals=M * hidden,
        bytes_accessed=(M * n_embd * (2 + 4)                       # x (bf16) in, y (f32) out
                        + 2 * n_embd * hidden * 2 * w_refetch      # W1 + W2 (bf16)
                        + (hidden + n_embd) * 4),                  # b1, b2 (f32)
    )

    out = pl.pallas_call(
        functools.partial(mlp_kernel, approximate=approximate),
        out_shape=jax.ShapeDtypeStruct((M, n_embd), jnp.float32),
        grid_spec=pltpu.PrefetchScalarGridSpec(
            num_scalar_prefetch=0,
            grid=grid,
            in_specs=[
                pl.BlockSpec((tm, n_embd), lambda i, k: (i, 0)),   # x rows
                pl.BlockSpec((n_embd, th), lambda i, k: (0, k)),   # W1 chunk
                pl.BlockSpec((1, th), lambda i, k: (0, k)),        # b1 chunk
                pl.BlockSpec((th, n_embd), lambda i, k: (k, 0)),   # W2 chunk
                pl.BlockSpec((1, n_embd), lambda i, k: (0, 0)),    # b2
            ],
            out_specs=pl.BlockSpec((tm, n_embd), lambda i, k: (i, 0)),
        ),
        compiler_params=pltpu.CompilerParams(
            dimension_semantics=("parallel", "arbitrary"),
            vmem_limit_bytes=vmem_limit,
        ),
        cost_estimate=cost,
    )(x_bf, w1_bf, b1_f, w2_bf, b2_f)
    return out


def mlp_forward(x, w1, b1, w2, b2, *, approximate=False):
    """x: (B, T, n_embd). Returns (B, T, n_embd) in x.dtype."""
    B, T, n_embd = x.shape
    hidden = w1.shape[1]
    M = B * T
    tm, th, vmem_limit = _choose_tiles(M, n_embd, hidden)
    out = _mlp_pallas(x.reshape(M, n_embd), w1, b1, w2, b2,
                      tm=tm, th=th, vmem_limit=vmem_limit,
                      approximate=approximate)
    return out.reshape(B, T, n_embd).astype(x.dtype)


def init_params(key, n_embd, bias=True, dtype=jnp.float32):
    hidden = 4 * n_embd
    k1, k2, k3, k4 = jax.random.split(key, 4)
    # PyTorch-like uniform(-1/sqrt(fan_in), 1/sqrt(fan_in)); stored pre-transposed
    # as (in, out) for the kernel.
    s1 = 1.0 / jnp.sqrt(n_embd)
    s2 = 1.0 / jnp.sqrt(hidden)
    w1 = jax.random.uniform(k1, (n_embd, hidden), dtype, -s1, s1)
    b1 = (jax.random.uniform(k2, (1, hidden), dtype, -s1, s1)
          if bias else jnp.zeros((1, hidden), dtype))
    w2 = jax.random.uniform(k3, (hidden, n_embd), dtype, -s2, s2)
    b2 = (jax.random.uniform(k4, (1, n_embd), dtype, -s2, s2)
          if bias else jnp.zeros((1, n_embd), dtype))
    return w1, b1, w2, b2


def mlp_reference(x, w1, b1, w2, b2):
    h = x @ w1 + b1[0]
    h = jax.nn.gelu(h, approximate=False)
    y = h @ w2 + b2[0]
    return y  # dropout = identity (eval)


if __name__ == "__main__":
    # config: n_embd=32, bias=True, dropout=0.0 (eval), batch=2, seq=8
    B, T, n_embd = 2, 8, 32
    key = jax.random.PRNGKey(0)
    kx, kp = jax.random.split(key)
    x = jax.random.normal(kx, (B, T, n_embd), jnp.float32)
    w1, b1, w2, b2 = init_params(kp, n_embd, bias=True)

    y = mlp_forward(x, w1, b1, w2, b2)
    jax.block_until_ready(y)

    y_ref = mlp_reference(x, w1, b1, w2, b2)
    assert y.shape == (B, T, n_embd)
    # Tolerance accounts for bf16 MXU operands (accumulation stays f32).
    assert jnp.allclose(y, y_ref, atol=3e-2, rtol=3e-2), "mismatch vs reference"

    print("KERNEL_OK")
</pallas_src>

<mosaic_0001>
module attributes {stable_mosaic.version = 11 : i64} {
  func.func @mlp_kernel(%arg0: i32, %arg1: i32, %arg2: memref<16x32xbf16, #tpu.memory_space<vmem>>, %arg3: memref<32x128xbf16, #tpu.memory_space<vmem>>, %arg4: memref<1x128xf32, #tpu.memory_space<vmem>>, %arg5: memref<128x32xbf16, #tpu.memory_space<vmem>>, %arg6: memref<1x32xf32, #tpu.memory_space<vmem>>, %arg7: memref<16x32xf32, #tpu.memory_space<vmem>>) attributes {dimension_semantics = [#tpu.dimension_semantics<parallel>, #tpu.dimension_semantics<arbitrary>], iteration_bounds = array<i64: 1, 1>, scalar_prefetch = 0 : i64, scratch_operands = 0 : i64, tpu.core_type = #tpu.core_type<tc>, window_params = [{transform_indices = @transform_0, window_bounds = array<i64: 16, 32>}, {transform_indices = @transform_1, window_bounds = array<i64: 32, 128>}, {transform_indices = @transform_2, window_bounds = array<i64: 1, 128>}, {transform_indices = @transform_3, window_bounds = array<i64: 128, 32>}, {pipeline_mode = #tpu.pipeline_mode<synchronous>, transform_indices = @transform_4, window_bounds = array<i64: 1, 32>}, {transform_indices = @transform_5, window_bounds = array<i64: 16, 32>}]} {
    %c0_i32 = arith.constant 0 : i32
    %0 = arith.cmpi eq, %arg1, %c0_i32 : i32
    %1 = arith.extui %0 : i1 to i32
    %c0_i32_0 = arith.constant 0 : i32
    %2 = arith.cmpi ne, %1, %c0_i32_0 : i32
    scf.if %2 {
      %c0_16 = arith.constant 0 : index
      %c0_17 = arith.constant 0 : index
      %23 = vector.load %arg6[%c0_16, %c0_17] : memref<1x32xf32, #tpu.memory_space<vmem>>, vector<1x32xf32>
      %24 = vector.shape_cast %23 : vector<1x32xf32> to vector<1x32xf32>
      %25 = vector.broadcast %24 : vector<1x32xf32> to vector<16x32xf32>
      %c0_18 = arith.constant 0 : index
      %c0_19 = arith.constant 0 : index
      %26 = vector.load %arg7[%c0_18, %c0_19] : memref<16x32xf32, #tpu.memory_space<vmem>>, vector<16x32xf32>
      tpu.vector_store %arg7[%c0_18, %c0_19], %25 {strides = array<i32>} : memref<16x32xf32, #tpu.memory_space<vmem>>, vector<16x32xf32>,
    } else {
    }
    %c0 = arith.constant 0 : index
    %c0_1 = arith.constant 0 : index
    %3 = vector.load %arg2[%c0, %c0_1] : memref<16x32xbf16, #tpu.memory_space<vmem>>, vector<16x32xbf16>
    %c0_2 = arith.constant 0 : index
    %c0_3 = arith.constant 0 : index
    %4 = vector.load %arg3[%c0_2, %c0_3] : memref<32x128xbf16, #tpu.memory_space<vmem>>, vector<32x128xbf16>
    %cst = arith.constant dense<0.000000e+00> : vector<16x128xf32>
    %5 = tpu.matmul %3, %4, %cst {dimension_numbers = #tpu.dot_dimension_numbers<[1], [0], [0], [1], [0, 0, 1, 1], [], []>} : vector<16x32xbf16>, vector<32x128xbf16>, vector<16x128xf32> -> vector<16x128xf32>
    %c0_4 = arith.constant 0 : index
    %c0_5 = arith.constant 0 : index
    %6 = vector.load %arg4[%c0_4, %c0_5] : memref<1x128xf32, #tpu.memory_space<vmem>>, vector<1x128xf32>
    %7 = vector.broadcast %6 : vector<1x128xf32> to vector<16x128xf32>
    %8 = arith.addf %5, %7 : vector<16x128xf32>
    %cst_6 = arith.constant 5.000000e-01 : f32
    %9 = vector.broadcast %cst_6 : f32 to vector<16x128xf32>
    %10 = arith.mulf %9, %8 : vector<16x128xf32>
    %cst_7 = arith.constant 0.707106769 : f32
    %11 = vector.broadcast %cst_7 : f32 to vector<16x128xf32>
    %12 = arith.mulf %8, %11 : vector<16x128xf32>
    %13 = math.erf %12 : vector<16x128xf32>
    %cst_8 = arith.constant 1.000000e+00 : f32
    %14 = vector.broadcast %cst_8 : f32 to vector<16x128xf32>
    %15 = arith.addf %14, %13 : vector<16x128xf32>
    %16 = arith.mulf %10, %15 : vector<16x128xf32>
    %c0_9 = arith.constant 0 : index
    %c0_10 = arith.constant 0 : index
    %17 = vector.load %arg7[%c0_9, %c0_10] : memref<16x32xf32, #tpu.memory_space<vmem>>, vector<16x32xf32>
    %18 = arith.truncf %16 : vector<16x128xf32> to vector<16x128xbf16>
    %c0_11 = arith.constant 0 : index
    %c0_12 = arith.constant 0 : index
    %19 = vector.load %arg5[%c0_11, %c0_12] : memref<128x32xbf16, #tpu.memory_space<vmem>>, vector<128x32xbf16>
    %cst_13 = arith.constant dense<0.000000e+00> : vector<16x32xf32>
    %20 = tpu.matmul %18, %19, %cst_13 {dimension_numbers = #tpu.dot_dimension_numbers<[1], [0], [0], [1], [0, 0, 1, 1], [], []>} : vector<16x128xbf16>, vector<128x32xbf16>, vector<16x32xf32> -> vector<16x32xf32>
    %21 = arith.addf %17, %20 : vector<16x32xf32>
    %c0_14 = arith.constant 0 : index
    %c0_15 = arith.constant 0 : index
    %22 = vector.load %arg7[%c0_14, %c0_15] : memref<16x32xf32, #tpu.memory_space<vmem>>, vector<16x32xf32>
    tpu.vector_store %arg7[%c0_14, %c0_15], %21 {strides = array<i32>} : memref<16x32xf32, #tpu.memory_space<vmem>>, vector<16x32xf32>,
    return
  }
  func.func @transform_0(%arg0: i32, %arg1: i32) -> (i32, i32) {
    %c0_i32 = arith.constant 0 : i32
    %c0_i32_0 = arith.constant 0 : i32
    return %arg0, %c0_i32 : i32, i32
  }
  func.func @transform_1(%arg0: i32, %arg1: i32) -> (i32, i32) {
    %c0_i32 = arith.constant 0 : i32
    %c0_i32_0 = arith.constant 0 : i32
    return %c0_i32, %arg1 : i32, i32
  }
  func.func @transform_2(%arg0: i32, %arg1: i32) -> (i32, i32) {
    %c0_i32 = arith.constant 0 : i32
    %c0_i32_0 = arith.constant 0 : i32
    return %c0_i32, %arg1 : i32, i32
  }
  func.func @transform_3(%arg0: i32, %arg1: i32) -> (i32, i32) {
    %c0_i32 = arith.constant 0 : i32
    %c0_i32_0 = arith.constant 0 : i32
    return %arg1, %c0_i32 : i32, i32
  }
  func.func @transform_4(%arg0: i32, %arg1: i32) -> (i32, i32) {
    %c0_i32 = arith.constant 0 : i32
    %c0_i32_0 = arith.constant 0 : i32
    %c0_i32_1 = arith.constant 0 : i32
    return %c0_i32, %c0_i32_0 : i32, i32
  }
  func.func @transform_5(%arg0: i32, %arg1: i32) -> (i32, i32) {
    %c0_i32 = arith.constant 0 : i32
    %c0_i32_0 = arith.constant 0 : i32
    return %arg0, %c0_i32 : i32, i32
  }
}

</mosaic_0001>

<llo_original>
// kernel: _mlp_pallas.1
$region0: #{_mlp_pallas.1}
  #allocation0 [shape = 'u32[]', space=smem, size = 0x4, offset = 0x4, fixed_abs, tag = 'smem constant byte address 0x4 - core index']
  #allocation1 [shape = 'u32[144,128]{1,0:T(1,128)}', space=vmem, size = 0x12000, scoped, tag = 'internal scratch']
  %s0 = inlined_call_operand.vmem [shape: bf16[16,32], index: 0, kind: input, shape index: {}]
  %s1 = inlined_call_operand.vmem [shape: bf16[32,128], index: 1, kind: input, shape index: {}]
  %s2 = inlined_call_operand.vmem [shape: f32[1,128], index: 2, kind: input, shape index: {}]
  %s3 = inlined_call_operand.vmem [shape: bf16[128,32], index: 3, kind: input, shape index: {}]
  %s4 = inlined_call_operand.vmem [shape: f32[1,32], index: 4, kind: input, shape index: {}]
  %s5 = inlined_call_operand.hbm [shape: f32[16,32], index: 5, kind: output, shape index: {}]
  %s6 = sld [smem:[#allocation0]]
  $region34: #{_mlp_pallas.1} parent=0
    _
  %s8 = ssub.s32 1, %s6
  %s9 = scalar_select 0, %s8, %s6
  $region1: #{_mlp_pallas.1} parent=0
    #allocation2 [shape = 'u8[8192]{0}', space=vmem, size = 0x2000, scoped, tag = 'output window, operand 0, single buffered']
    #allocation3 [shape = 's32[1]{0}', space=sflag, size = 0x4, scoped, tag = 'scoped memory for _mlp_pallas.1']
    %10 = vsyncpa [#allocation3], 0
    // Predicated region
    $region2: #{_mlp_pallas.1} parent=1 // pred_check
      _
    $region3: #{_mlp_pallas.1} parent=1 // pred_check_branch
      %12 = sbr.rel (0) target = $region5
    $region4: #{_mlp_pallas.1} parent=1 // pred_region
      _
    $region5: #{_mlp_pallas.1} parent=1 // pred_fallthru
      _
    // Predicated region
    $region6: #{_mlp_pallas.1} parent=1 // pred_check
      _
    $region7: #{_mlp_pallas.1} parent=1 // pred_check_branch
      %14 = sbr.rel (0) target = $region9
    $region8: #{_mlp_pallas.1} parent=1 // pred_region
      _
    $region9: #{_mlp_pallas.1} parent=1 // pred_fallthru
      _
    // Predicated region
    $region10: #{_mlp_pallas.1} parent=1 // pred_check
      _
    $region11: #{_mlp_pallas.1} parent=1 // pred_check_branch
      %16 = sbr.rel (0) target = $region13
    $region12: #{_mlp_pallas.1} parent=1 // pred_region
      _
    $region13: #{_mlp_pallas.1} parent=1 // pred_fallthru
      _
    // Predicated region
    $region14: #{_mlp_pallas.1} parent=1 // pred_check
      _
    $region15: #{_mlp_pallas.1} parent=1 // pred_check_branch
      %18 = sbr.rel (0) target = $region17
    $region16: #{_mlp_pallas.1} parent=1 // pred_region
      _
    $region17: #{_mlp_pallas.1} parent=1 // pred_fallthru
      _
    // Predicated region
    $region18: #{_mlp_pallas.1} parent=1 // pred_check
      _
    $region19: #{_mlp_pallas.1} parent=1 // pred_check_branch
      %20 = sbr.rel (0) target = $region21
    $region20: #{_mlp_pallas.1} parent=1 // pred_region
      _
    $region21: #{_mlp_pallas.1} parent=1 // pred_fallthru
      _
    %p22 = scmp.eq.s32.totalorder 0, 0
    // Predicated region
    $region22: #{_mlp_pallas.1} parent=1 // pred_check
      %p23 = pneg %p22
    $region23: #{_mlp_pallas.1} parent=1 // pred_check_branch
      %25 = sbr.rel (%p23) target = $region25
    $region24: #{_mlp_pallas.1} parent=1 // pred_region
      %v26 = vld [vmem:[%s4] sm:$0x1]
      %v28 = vlaneseq
      %v29 = vshrl.u32 %v28, 7
      %v30 = vsub.s32 0, %v29
      %v31 = vrot.slane %v26, %v30
      %vm33 = vcmask 261120
      %34 = vst.msk [vmem:[#allocation2] sm:$0xff] %vm33, %v31
      %35 = vst.msk [vmem:[#allocation2 + $0x8] sm:$0xff] %vm33, %v31
    $region25: #{_mlp_pallas.1} parent=1 // pred_fallthru
      _
    %v36 = vld [vmem:[%s0] sm:$0xf]
    %v37 = vld [vmem:[%s0 + $0x4] sm:$0xf]
    %v38 = vld [vmem:[%s1] sm:$0xf]
    %v39 = vld [vmem:[%s1 + $0x4] sm:$0xf]
    %v40 = vld [vmem:[%s1 + $0x8] sm:$0xf]
    %v41 = vld [vmem:[%s1 + $0xc] sm:$0xf]
    %v42 = vld [vmem:[%s2] sm:$0x1]
    %v44 = vlaneseq
    %v45 = vshrl.u32 %v44, 7
    %v46 = vsub.s32 0, %v45
    %v47 = vrot.slane %v42, %v46
    %v51 = vunpack.c.l.b16 %v36
    %v52 = vunpack.c.l.b16 %v37
    %v53 = vpack.c.b16 %v52, %v51
    %v58 = vunpack.c.l.b16 %v38
    %v59 = vunpack.c.l.b16 %v39
    %v60 = vunpack.c.l.b16 %v40
    %v61 = vunpack.c.l.b16 %v41
    %v62 = vpack.c.b16 %v59, %v58
    %v63 = vpack.c.b16 %v61, %v60
    %vm66 = vcmask 261120
    %v68 = vsel %vm66, %v53, 0
    %70 = vmatprep.subr.bf16.mxu0 0
    %71 = vmatpush1.bf16.msra.mxu0 0
    %72 = vmatprep.subr.bf16.mxu0 0
    %73 = vmatpush1.bf16.msra.mxu0 0
    %74 = vmatprep.subr.bf16.mxu0 0
    %75 = vmatpush1.bf16.msra.mxu0 0
    %76 = vmatprep.subr.bf16.mxu0 0
    %77 = vmatpush1.bf16.msra.mxu0 0
    %78 = vmatprep.subr.bf16.mxu0 0
    %79 = vmatpush1.bf16.msra.mxu0 0
    %80 = vmatprep.subr.bf16.mxu0 0
    %81 = vmatpush1.bf16.msra.mxu0 0
    %82 = vmatprep.subr.bf16.mxu0 0
    %83 = vmatpush1.bf16.msra.mxu0 %v63
    %84 = vmatprep.subr.bf16.mxu0 0
    %85 = vmatpush1.bf16.msra.mxu0 %v62
    %86 = vmatprep.subr.bf16.mxu0 0
    %87 = vmatpush2.bf16.msra.mxu0 0
    %88 = vmatprep.subr.bf16.mxu0 0
    %89 = vmatpush2.bf16.msra.mxu0 0
    %90 = vmatprep.subr.bf16.mxu0 0
    %91 = vmatpush2.bf16.msra.mxu0 0
    %92 = vmatprep.subr.bf16.mxu0 0
    %93 = vmatpush2.bf16.msra.mxu0 0
    %94 = vmatprep.subr.bf16.mxu0 0
    %95 = vmatpush2.bf16.msra.mxu0 0
    %96 = vmatprep.subr.bf16.mxu0 0
    %97 = vmatpush2.bf16.msra.mxu0 0
    %98 = vmatprep.subr.bf16.mxu0 0
    %99 = vmatpush2.bf16.msra.mxu0 0
    %100 = vmatprep.subr.bf16.mxu0 0
    %101 = vmatpush2.bf16.msra.mxu0 0
    %102 = vmatprep.mubr.bf16.mxu0 0
    %103 = vmatmul.mubr.bf16.gmra.mxu0 %v68
    %v104 = vpop.f32.mrf.mxu0
    %v105 = vadd.f32 %v47, %v104
    %v106 = vpop.f32.mrf.mxu0
    %v107 = vpop.f32.mrf.mxu0
    %v108 = vadd.f32 %v47, %v107
    %v109 = vpop.f32.mrf.mxu0
    %110 = vdwg.mxu0
    %v111 = vmul.f32 %v105, 0.5
    %v112 = vmul.f32 %v108, 0.5
    %v113 = vmul.f32 %v105, 0.70710677
    %v114 = vmul.f32 %v108, 0.70710677
    %v115 = verf.f32.pop %v113
    %v116 = verf.f32.pop %v114
    %v117 = vadd.f32 %v115, 1.0
    %v118 = vadd.f32 %v116, 1.0
    %v119 = vmul.f32 %v111, %v117
    %v120 = vmul.f32 %v112, %v118
    %v121 = vld [vmem:[#allocation2] sm:$0xff]
    %v122 = vld [vmem:[#allocation2 + $0x8] sm:$0xff]
    %v123 = vpack.c.bf16 %v120, %v119
    %v124 = vld [vmem:[%s3] sm:$0xf]
    %v125 = vld [vmem:[%s3 + $0x4] sm:$0xf]
    %v126 = vld [vmem:[%s3 + $0x8] sm:$0xf]
    %v127 = vld [vmem:[%s3 + $0xc] sm:$0xf]
    %v128 = vld [vmem:[%s3 + $0x10] sm:$0xf]
    %v129 = vld [vmem:[%s3 + $0x14] sm:$0xf]
    %v130 = vld [vmem:[%s3 + $0x18] sm:$0xf]
    %v131 = vld [vmem:[%s3 + $0x1c] sm:$0xf]
    %v132 = vld [vmem:[%s3 + $0x20] sm:$0xf]
    %v133 = vld [vmem:[%s3 + $0x24] sm:$0xf]
    %v134 = vld [vmem:[%s3 + $0x28] sm:$0xf]
    %v135 = vld [vmem:[%s3 + $0x2c] sm:$0xf]
    %v136 = vld [vmem:[%s3 + $0x30] sm:$0xf]
    %v137 = vld [vmem:[%s3 + $0x34] sm:$0xf]
    %v138 = vld [vmem:[%s3 + $0x38] sm:$0xf]
    %v139 = vld [vmem:[%s3 + $0x3c] sm:$0xf]
    %v156 = vunpack.c.l.b16 %v124
    %v157 = vunpack.c.l.b16 %v125
    %v158 = vunpack.c.l.b16 %v126
    %v159 = vunpack.c.l.b16 %v127
    %v160 = vunpack.c.l.b16 %v128
    %v161 = vunpack.c.l.b16 %v129
    %v162 = vunpack.c.l.b16 %v130
    %v163 = vunpack.c.l.b16 %v131
    %v164 = vunpack.c.l.b16 %v132
    %v165 = vunpack.c.l.b16 %v133
    %v166 = vunpack.c.l.b16 %v134
    %v167 = vunpack.c.l.b16 %v135
    %v168 = vunpack.c.l.b16 %v136
    %v169 = vunpack.c.l.b16 %v137
    %v170 = vunpack.c.l.b16 %v138
    %v171 = vunpack.c.l.b16 %v139
    %v172 = vpack.c.b16 %v157, %v156
    %v173 = vpack.c.b16 %v159, %v158
    %v174 = vpack.c.b16 %v161, %v160
    %v175 = vpack.c.b16 %v163, %v162
    %v176 = vpack.c.b16 %v165, %v164
    %v177 = vpack.c.b16 %v167, %v166
    %v178 = vpack.c.b16 %v169, %v168
    %v179 = vpack.c.b16 %v171, %v170
    %188 = vmatprep.subr.bf16.mxu0 0
    %189 = vmatpush1.bf16.msra.mxu0 %v179
    %190 = vmatprep.subr.bf16.mxu0 0
    %191 = vmatpush1.bf16.msra.mxu0 %v178
    %192 = vmatprep.subr.bf16.mxu0 0
    %193 = vmatpush1.bf16.msra.mxu0 %v177
    %194 = vmatprep.subr.bf16.mxu0 0
    %195 = vmatpush1.bf16.msra.mxu0 %v176
    %196 = vmatprep.subr.bf16.mxu0 0
    %197 = vmatpush1.bf16.msra.mxu0 %v175
    %198 = vmatprep.subr.bf16.mxu0 0
    %199 = vmatpush1.bf16.msra.mxu0 %v174
    %200 = vmatprep.subr.bf16.mxu0 0
    %201 = vmatpush1.bf16.msra.mxu0 %v173
    %202 = vmatprep.subr.bf16.mxu0 0
    %203 = vmatpush1.bf16.msra.mxu0 %v172
    %204 = vmatprep.subr.bf16.mxu0 0
    %205 = vmatpush2.bf16.msra.mxu0 0
    %206 = vmatprep.subr.bf16.mxu0 0
    %207 = vmatpush2.bf16.msra.mxu0 0
    %208 = vmatprep.subr.bf16.mxu0 0
    %209 = vmatpush2.bf16.msra.mxu0 0
    %210 = vmatprep.subr.bf16.mxu0 0
    %211 = vmatpush2.bf16.msra.mxu0 0
    %212 = vmatprep.subr.bf16.mxu0 0
    %213 = vmatpush2.bf16.msra.mxu0 0
    %214 = vmatprep.subr.bf16.mxu0 0
    %215 = vmatpush2.bf16.msra.mxu0 0
    %216 = vmatprep.subr.bf16.mxu0 0
    %217 = vmatpush2.bf16.msra.mxu0 0
    %218 = vmatprep.subr.bf16.mxu0 0
    %219 = vmatpush2.bf16.msra.mxu0 0
    %220 = vmatprep.mubr.bf16.mxu0 0
    %221 = vmatmul.mubr.bf16.gmra.mxu0 %v123
    %v222 = vpop.f32.mrf.mxu0
    %v223 = vadd.f32 0.0, %v222
    %v224 = vpop.f32.mrf.mxu0
    %v225 = vpop.f32.mrf.mxu0
    %v226 = vadd.f32 0.0, %v225
    %v227 = vpop.f32.mrf.mxu0
    %228 = vdwg.mxu0
    %v229 = vadd.f32 %v121, %v223
    %v230 = vadd.f32 %v122, %v226
    %231 = vst.msk [vmem:[#allocation2] sm:$0xff] %vm66, %v229
    %232 = vst.msk [vmem:[#allocation2 + $0x8] sm:$0xff] %vm66, %v230
    // Predicated region
    $region26: #{_mlp_pallas.1} parent=1 // pred_check
      _
    $region27: #{_mlp_pallas.1} parent=1 // pred_check_branch
      %234 = sbr.rel (0) target = $region29
    $region28: #{_mlp_pallas.1} parent=1 // pred_region
      %s236 = ssub.s32 256, 256
      %237 = vsyncadd [#allocation3], %s236
      %s238 = sshll.u32 [#allocation2], 4
      %s239 = int_to_ptr.vmem [resolvable:$true] %s238
      %244 = dma.vmem_to_hbm [thread:$0]  %s239, 256, %s5, [#allocation3], 128, 128, 8
    $region29: #{_mlp_pallas.1} parent=1 // pred_fallthru
      _
    // Predicated region
    $region30: #{_mlp_pallas.1} parent=1 // pred_check
      _
    $region31: #{_mlp_pallas.1} parent=1 // pred_check_branch
      %246 = sbr.rel (0) target = $region33
    $region32: #{_mlp_pallas.1} parent=1 // pred_region
      %247 = dma.done [#allocation3], 256
    $region33: #{_mlp_pallas.1} parent=1 // pred_fallthru
      _
    %248 = vsyncpa [#allocation3], 1

</llo_original>
